<compile_context>
chip_gen: v7x
topology: tpu7x:2x2x1
jax: 0.10.0
libtpu: 0.0.40
codegen_flags: <defaults>
</compile_context>

<pallas_src>
import functools
import math

import jax
import jax.numpy as jnp
from jax.experimental import pallas as pl
from jax.experimental.pallas import tpu as pltpu


def _gelu(x, approximate):
    if approximate:
        # tanh-approximate GELU: transcendental goes to the EUP (own VLIW
        # slot), nearly free under an MXU-bound schedule.
        return jax.nn.gelu(x, approximate=True)
    # Exact erf form: matches torch.nn.functional.gelu's default.
    return 0.5 * x * (1.0 + jax.lax.erf(x * (1.0 / math.sqrt(2.0))))


def _ffn_kernel(x_ref, w1_ref, b1_ref, w2_ref, b2_ref, o_ref, acc_ref, *,
                tile_f, approximate_gelu):
    k = pl.program_id(1)

    # First hidden chunk for this token tile: init the f32 accumulator with
    # the fc2 bias (so b2 is added exactly once).
    @pl.when(k == 0)
    def _():
        acc_ref[...] = jnp.broadcast_to(
            b2_ref[...].astype(jnp.float32), acc_ref.shape)

    # fc1 chunk: [tile_m, dim] @ [dim, tile_f] on the MXU, f32 accumulation.
    h = jnp.dot(x_ref[...], w1_ref[...], preferred_element_type=jnp.float32)

    # b1 lives in VMEM as one full (1, ffn_pad) block; slice the chunk here
    # instead of issuing a tiny per-step DMA.
    f0 = pl.multiple_of(k * tile_f, 128)
    b1_chunk = b1_ref[:, pl.ds(f0, tile_f)]
    h = _gelu(h + b1_chunk.astype(jnp.float32), approximate_gelu)

    # fc2 chunk: accumulate [tile_m, tile_f] @ [tile_f, dim] into the resident
    # accumulator.  Cast h back to the weight dtype so bf16 stays on the
    # native MXU path.
    acc_ref[...] += jnp.dot(h.astype(w2_ref.dtype), w2_ref[...],
                            preferred_element_type=jnp.float32)

    # Last hidden chunk: final GELU, cast, store (lane-dense output).
    @pl.when(k == pl.num_programs(1) - 1)
    def _():
        o_ref[...] = _gelu(acc_ref[...], approximate_gelu).astype(o_ref.dtype)


def _round_up(x, m):
    return (x + m - 1) // m * m


def _vmem_capacity_bytes():
    try:
        cap = getattr(pltpu.get_tpu_info(), "vmem_capacity_bytes", None)
        if cap:
            return int(cap)
    except Exception:
        pass
    return 64 << 20  # conservative fallback (v7x-sized VMEM)


def ffn_pallas(x, w1, b1, w2, b2, *, tile_m=None, tile_f=None,
               weight_resident=None, approximate_gelu=False,
               vmem_limit_bytes=None):
    """Fused fc1 -> GELU -> fc2 -> GELU.

    x:  [..., dim]
    w1: [dim, ffn_dim]   (pre-transposed; nn.Linear stores [out, in])
    b1: [ffn_dim]
    w2: [ffn_dim, dim]
    b2: [dim]

    approximate_gelu=False matches torch's exact-erf F.gelu; set True once the
    kernel is MXU-bound (tanh-GELU runs on the EUP and is effectively free).
    """
    orig_shape = x.shape
    dim = int(orig_shape[-1])
    ffn_dim = int(w1.shape[1])

    x2d = x.reshape(-1, dim)
    m = int(x2d.shape[0])

    act_b = x.dtype.itemsize
    w_b = w1.dtype.itemsize

    # ---- per-generation VMEM budget & default token tile --------------------
    vmem_cap = _vmem_capacity_bytes()
    big_vmem = vmem_cap >= (96 << 20)          # v5e/v6e: 128 MiB, v7x: 64 MiB
    if vmem_limit_bytes is None:
        vmem_limit_bytes = int(vmem_cap - ((24 << 20) if big_vmem else (8 << 20)))
    budget = int(vmem_limit_bytes) - (2 << 20)  # slack for internal scratch

    if tile_m is None:
        # Weight chunks are re-fetched per token tile -> intensity ~ tile_m
        # flop per weight byte.  768 (multiple of 256) clears the roofline on
        # v5e/v6e; 512 keeps v7x compute-bound inside its 64 MiB VMEM.
        tile_m = 768 if big_vmem else 512
    tile_m = max(8, min(_round_up(int(tile_m), 8), _round_up(m, 8)))

    ffn_pad128 = _round_up(ffn_dim, 128)

    def est(tm, tf, nbuf_w, ffn_pad):
        # Full per-step VMEM footprint, including the fc1 intermediate h
        # (f32 + its weight-dtype copy) and the bias blocks.
        return (2 * tm * dim * act_b                       # x tile (dbl-buffered)
                + 2 * tm * dim * act_b                     # out tile
                + nbuf_w * dim * tf * w_b                  # W1 chunk(s)
                + nbuf_w * tf * dim * w_b                  # W2 chunk(s)
                + 2 * (ffn_pad * b1.dtype.itemsize + dim * b2.dtype.itemsize)
                + tm * dim * 4                             # f32 accumulator
                + tm * tf * (4 + w_b))                     # h (f32) + h cast

    # ---- weight-resident vs streaming ---------------------------------------
    if weight_resident is None:
        weight_resident = est(tile_m, ffn_pad128, 1, ffn_pad128) <= budget

    if weight_resident:
        # Weights fit: one chunk, fetched once, kept resident (single-buffered)
        # across every token tile -- the memory-optimal schedule.
        tile_f = ffn_pad128
        ffn_pad = ffn_pad128
        nbuf_w = 1
    else:
        nbuf_w = 2
        if tile_f is None:
            tile_f = 512
        tile_f = max(128, min(_round_up(int(tile_f), 128), ffn_pad128))
        # Shrink to fit the budget: halve the hidden chunk first (floor 256 =
        # full MXU width), only then shrink the token tile.
        while est(tile_m, tile_f, nbuf_w, _round_up(ffn_dim, tile_f)) > budget:
            if tile_f > 256:
                tile_f = max(256, tile_f // 2)
            elif tile_m > 256:
                tile_m = max(256, _round_up(tile_m // 2, 8))
            else:
                break
        ffn_pad = _round_up(ffn_dim, tile_f)
    num_k = ffn_pad // tile_f

    # ---- padding (token rows + hidden dim) -----------------------------------
    m_pad = _round_up(m, tile_m)
    if m_pad != m:
        x2d = jnp.pad(x2d, ((0, m_pad - m), (0, 0)))
    if ffn_pad != ffn_dim:
        # Zero-padded fc1 columns produce gelu(0) == 0, which contributes
        # nothing through the zero-padded fc2 rows -> numerically exact.
        # (In production, pre-pad the weights once instead of per call.)
        w1 = jnp.pad(w1, ((0, 0), (0, ffn_pad - ffn_dim)))
        b1 = jnp.pad(b1, (0, ffn_pad - ffn_dim))
        w2 = jnp.pad(w2, ((0, ffn_pad - ffn_dim), (0, 0)))

    b1_2d = b1.reshape(1, ffn_pad)
    b2_2d = b2.reshape(1, dim)

    if weight_resident:
        w1_spec = pl.BlockSpec((dim, tile_f), lambda i, k: (0, 0),
                               pipeline_mode=pl.Buffered(1))
        w2_spec = pl.BlockSpec((tile_f, dim), lambda i, k: (0, 0),
                               pipeline_mode=pl.Buffered(1))
    else:
        w1_spec = pl.BlockSpec((dim, tile_f), lambda i, k: (0, k))
        w2_spec = pl.BlockSpec((tile_f, dim), lambda i, k: (k, 0))

    kernel = functools.partial(_ffn_kernel, tile_f=tile_f,
                               approximate_gelu=approximate_gelu)

    # TODO(synk): for v7x decode-style shapes (1-2 token tiles) split hidden
    # chunks across the two TensorCores instead of relying on the "parallel"
    # token axis, so the second core is not idle and the duplicated weight
    # streaming from shared HBM is avoided.
    out = pl.pallas_call(
        kernel,
        out_shape=jax.ShapeDtypeStruct((m_pad, dim), x.dtype),
        grid_spec=pltpu.PrefetchScalarGridSpec(
            num_scalar_prefetch=0,
            grid=(m_pad // tile_m, num_k),
            in_specs=[
                pl.BlockSpec((tile_m, dim), lambda i, k: (i, 0)),    # x rows
                w1_spec,                                             # W1 chunk
                pl.BlockSpec((1, ffn_pad), lambda i, k: (0, 0)),     # b1 (full)
                w2_spec,                                             # W2 chunk
                pl.BlockSpec((1, dim), lambda i, k: (0, 0)),         # b2
            ],
            out_specs=pl.BlockSpec((tile_m, dim), lambda i, k: (i, 0)),
            scratch_shapes=[pltpu.VMEM((tile_m, dim), jnp.float32)],
        ),
        compiler_params=pltpu.CompilerParams(
            dimension_semantics=("parallel", "arbitrary"),
            vmem_limit_bytes=int(vmem_limit_bytes)),
    )(x2d, w1, b1_2d, w2, b2_2d)

    if m_pad != m:
        out = out[:m]
    return out.reshape(orig_shape)


def init_ffn_params(key, dim, ffn_dim, dtype=jnp.float32):
    """Mirrors nn.Linear's U(-1/sqrt(fan_in), 1/sqrt(fan_in)) init.

    Weights are returned already transposed to [in, out] layout.
    """
    k1, k2, k3, k4 = jax.random.split(key, 4)
    bound1 = 1.0 / math.sqrt(dim)
    bound2 = 1.0 / math.sqrt(ffn_dim)
    w1 = jax.random.uniform(k1, (dim, ffn_dim), dtype, -bound1, bound1)
    b1 = jax.random.uniform(k2, (ffn_dim,), dtype, -bound1, bound1)
    w2 = jax.random.uniform(k3, (ffn_dim, dim), dtype, -bound2, bound2)
    b2 = jax.random.uniform(k4, (dim,), dtype, -bound2, bound2)
    return w1, b1, w2, b2


def ffn_ref(x, w1, b1, w2, b2, approximate=False):
    h = _gelu(x @ w1 + b1, approximate)
    return _gelu(h @ w2 + b2, approximate)


if __name__ == "__main__":
    # Small but lane-aligned shapes (dim multiple of 128 -> unmasked stores),
    # with a row count that is NOT a tile multiple to exercise padding.
    dim, ffn_dim = 128, 256
    batch, seq = 2, 36          # m = 72 tokens

    key = jax.random.PRNGKey(0)
    kx, kp, kq = jax.random.split(key, 3)
    x = jax.random.normal(kx, (batch, seq, dim), jnp.float32)
    w1, b1, w2, b2 = init_ffn_params(kp, dim, ffn_dim)

    x2 = x.reshape(-1, dim)
    ref_exact = ffn_ref(x2, w1, b1, w2, b2, approximate=False).reshape(x.shape)
    ref_tanh = ffn_ref(x2, w1, b1, w2, b2, approximate=True).reshape(x.shape)

    # 1) production defaults: weight-resident single chunk, exact (erf) GELU
    #    matching torch.nn.functional.gelu's default.
    out1 = jax.block_until_ready(ffn_pallas(x, w1, b1, w2, b2))

    # 2) forced weight-streaming path: multiple token tiles (padded ragged last
    #    tile) and multi-step accumulation over hidden chunks + b1 slicing.
    out2 = jax.block_until_ready(
        ffn_pallas(x, w1, b1, w2, b2, tile_m=64, tile_f=128,
                   weight_resident=False))

    # 3) tanh-approximate GELU (EUP path, recommended once MXU-bound).
    out3 = jax.block_until_ready(
        ffn_pallas(x, w1, b1, w2, b2, approximate_gelu=True))

    # 4) hidden dim not a multiple of 128: exercises the zero-padding of
    #    W1 / b1 / W2 along the ffn axis in the streaming path.
    ffn_odd = 200
    w1o, b1o, w2o, b2o = init_ffn_params(kq, dim, ffn_odd)
    ref_odd = ffn_ref(x2, w1o, b1o, w2o, b2o, approximate=False).reshape(x.shape)
    out4 = jax.block_until_ready(
        ffn_pallas(x, w1o, b1o, w2o, b2o, tile_f=128, weight_resident=False))

    for out, ref in ((out1, ref_exact), (out2, ref_exact),
                     (out3, ref_tanh), (out4, ref_odd)):
        assert out.shape == x.shape
        assert jnp.allclose(out, ref, atol=3e-5, rtol=3e-5), \
            "mismatch vs JAX reference"

    print("KERNEL_OK")
</pallas_src>

<mosaic_0001>
module attributes {stable_mosaic.version = 11 : i64} {
  func.func @_ffn_kernel(%arg0: i32, %arg1: i32, %arg2: memref<72x128xf32, #tpu.memory_space<vmem>>, %arg3: memref<128x256xf32, #tpu.memory_space<vmem>>, %arg4: memref<1x256xf32, #tpu.memory_space<vmem>>, %arg5: memref<256x128xf32, #tpu.memory_space<vmem>>, %arg6: memref<1x128xf32, #tpu.memory_space<vmem>>, %arg7: memref<72x128xf32, #tpu.memory_space<vmem>>, %arg8: memref<72x128xf32, #tpu.memory_space<vmem>>) attributes {dimension_semantics = [#tpu.dimension_semantics<parallel>, #tpu.dimension_semantics<arbitrary>], iteration_bounds = array<i64: 1, 1>, scalar_prefetch = 0 : i64, scratch_operands = 1 : i64, tpu.core_type = #tpu.core_type<tc>, window_params = [{transform_indices = @transform_0, window_bounds = array<i64: 72, 128>}, {pipeline_mode = #tpu.pipeline_mode<synchronous>, transform_indices = @transform_1, window_bounds = array<i64: 128, 256>}, {pipeline_mode = #tpu.pipeline_mode<synchronous>, transform_indices = @transform_2, window_bounds = array<i64: 1, 256>}, {pipeline_mode = #tpu.pipeline_mode<synchronous>, transform_indices = @transform_3, window_bounds = array<i64: 256, 128>}, {pipeline_mode = #tpu.pipeline_mode<synchronous>, transform_indices = @transform_4, window_bounds = array<i64: 1, 128>}, {transform_indices = @transform_5, window_bounds = array<i64: 72, 128>}]} {
    %c0_i32 = arith.constant 0 : i32
    %0 = arith.cmpi eq, %arg1, %c0_i32 : i32
    %1 = arith.extui %0 : i1 to i32
    %c0_i32_0 = arith.constant 0 : i32
    %2 = arith.cmpi ne, %1, %c0_i32_0 : i32
    scf.if %2 {
      %c0_17 = arith.constant 0 : index
      %c0_18 = arith.constant 0 : index
      %28 = vector.load %arg6[%c0_17, %c0_18] : memref<1x128xf32, #tpu.memory_space<vmem>>, vector<1x128xf32>
      %29 = vector.shape_cast %28 : vector<1x128xf32> to vector<1x128xf32>
      %30 = vector.broadcast %29 : vector<1x128xf32> to vector<72x128xf32>
      %c0_19 = arith.constant 0 : index
      %c0_20 = arith.constant 0 : index
      %31 = vector.load %arg8[%c0_19, %c0_20] : memref<72x128xf32, #tpu.memory_space<vmem>>, vector<72x128xf32>
      tpu.vector_store %arg8[%c0_19, %c0_20], %30 {strides = array<i32>} : memref<72x128xf32, #tpu.memory_space<vmem>>, vector<72x128xf32>,
    } else {
    }
    %c0 = arith.constant 0 : index
    %c0_1 = arith.constant 0 : index
    %3 = vector.load %arg2[%c0, %c0_1] : memref<72x128xf32, #tpu.memory_space<vmem>>, vector<72x128xf32>
    %c0_2 = arith.constant 0 : index
    %c0_3 = arith.constant 0 : index
    %4 = vector.load %arg3[%c0_2, %c0_3] : memref<128x256xf32, #tpu.memory_space<vmem>>, vector<128x256xf32>
    %cst = arith.constant dense<0.000000e+00> : vector<72x256xf32>
    %5 = tpu.matmul %3, %4, %cst {dimension_numbers = #tpu.dot_dimension_numbers<[1], [0], [0], [1], [0, 0, 1, 1], [], []>} : vector<72x128xf32>, vector<128x256xf32>, vector<72x256xf32> -> vector<72x256xf32>
    %c256_i32 = arith.constant 256 : i32
    %6 = arith.muli %arg1, %c256_i32 : i32
    %7 = tpu.assume_multiple %6, 128 : i32
    %c0_4 = arith.constant 0 : index
    %8 = arith.index_cast %7 : i32 to index
    %9 = vector.load %arg4[%c0_4, %8] : memref<1x256xf32, #tpu.memory_space<vmem>>, vector<1x256xf32>
    %10 = vector.broadcast %9 : vector<1x256xf32> to vector<72x256xf32>
    %11 = arith.addf %5, %10 : vector<72x256xf32>
    %cst_5 = arith.constant 5.000000e-01 : f32
    %12 = vector.broadcast %cst_5 : f32 to vector<72x256xf32>
    %13 = arith.mulf %12, %11 : vector<72x256xf32>
    %cst_6 = arith.constant 0.707106769 : f32
    %14 = vector.broadcast %cst_6 : f32 to vector<72x256xf32>
    %15 = arith.mulf %11, %14 : vector<72x256xf32>
    %16 = math.erf %15 : vector<72x256xf32>
    %cst_7 = arith.constant 1.000000e+00 : f32
    %17 = vector.broadcast %cst_7 : f32 to vector<72x256xf32>
    %18 = arith.addf %17, %16 : vector<72x256xf32>
    %19 = arith.mulf %13, %18 : vector<72x256xf32>
    %c0_8 = arith.constant 0 : index
    %c0_9 = arith.constant 0 : index
    %20 = vector.load %arg8[%c0_8, %c0_9] : memref<72x128xf32, #tpu.memory_space<vmem>>, vector<72x128xf32>
    %c0_10 = arith.constant 0 : index
    %c0_11 = arith.constant 0 : index
    %21 = vector.load %arg5[%c0_10, %c0_11] : memref<256x128xf32, #tpu.memory_space<vmem>>, vector<256x128xf32>
    %cst_12 = arith.constant dense<0.000000e+00> : vector<72x128xf32>
    %22 = tpu.matmul %19, %21, %cst_12 {dimension_numbers = #tpu.dot_dimension_numbers<[1], [0], [0], [1], [0, 0, 1, 1], [], []>} : vector<72x256xf32>, vector<256x128xf32>, vector<72x128xf32> -> vector<72x128xf32>
    %23 = arith.addf %20, %22 : vector<72x128xf32>
    %c0_13 = arith.constant 0 : index
    %c0_14 = arith.constant 0 : index
    %24 = vector.load %arg8[%c0_13, %c0_14] : memref<72x128xf32, #tpu.memory_space<vmem>>, vector<72x128xf32>
    tpu.vector_store %arg8[%c0_13, %c0_14], %23 {strides = array<i32>} : memref<72x128xf32, #tpu.memory_space<vmem>>, vector<72x128xf32>,
    %c0_i32_15 = arith.constant 0 : i32
    %25 = arith.cmpi eq, %arg1, %c0_i32_15 : i32
    %26 = arith.extui %25 : i1 to i32
    %c0_i32_16 = arith.constant 0 : i32
    %27 = arith.cmpi ne, %26, %c0_i32_16 : i32
    scf.if %27 {
      %c0_17 = arith.constant 0 : index
      %c0_18 = arith.constant 0 : index
      %28 = vector.load %arg8[%c0_17, %c0_18] : memref<72x128xf32, #tpu.memory_space<vmem>>, vector<72x128xf32>
      %cst_19 = arith.constant 5.000000e-01 : f32
      %29 = vector.broadcast %cst_19 : f32 to vector<72x128xf32>
      %30 = arith.mulf %29, %28 : vector<72x128xf32>
      %cst_20 = arith.constant 0.707106769 : f32
      %31 = vector.broadcast %cst_20 : f32 to vector<72x128xf32>
      %32 = arith.mulf %28, %31 : vector<72x128xf32>
      %33 = math.erf %32 : vector<72x128xf32>
      %cst_21 = arith.constant 1.000000e+00 : f32
      %34 = vector.broadcast %cst_21 : f32 to vector<72x128xf32>
      %35 = arith.addf %34, %33 : vector<72x128xf32>
      %36 = arith.mulf %30, %35 : vector<72x128xf32>
      %c0_22 = arith.constant 0 : index
      %c0_23 = arith.constant 0 : index
      %37 = vector.load %arg7[%c0_22, %c0_23] : memref<72x128xf32, #tpu.memory_space<vmem>>, vector<72x128xf32>
      tpu.vector_store %arg7[%c0_22, %c0_23], %36 {strides = array<i32>} : memref<72x128xf32, #tpu.memory_space<vmem>>, vector<72x128xf32>,
    } else {
    }
    return
  }
  func.func @transform_0(%arg0: i32, %arg1: i32) -> (i32, i32) {
    %c0_i32 = arith.constant 0 : i32
    %c0_i32_0 = arith.constant 0 : i32
    return %arg0, %c0_i32 : i32, i32
  }
  func.func @transform_1(%arg0: i32, %arg1: i32) -> (i32, i32) {
    %c0_i32 = arith.constant 0 : i32
    %c0_i32_0 = arith.constant 0 : i32
    %c0_i32_1 = arith.constant 0 : i32
    return %c0_i32, %c0_i32_0 : i32, i32
  }
  func.func @transform_2(%arg0: i32, %arg1: i32) -> (i32, i32) {
    %c0_i32 = arith.constant 0 : i32
    %c0_i32_0 = arith.constant 0 : i32
    %c0_i32_1 = arith.constant 0 : i32
    return %c0_i32, %c0_i32_0 : i32, i32
  }
  func.func @transform_3(%arg0: i32, %arg1: i32) -> (i32, i32) {
    %c0_i32 = arith.constant 0 : i32
    %c0_i32_0 = arith.constant 0 : i32
    %c0_i32_1 = arith.constant 0 : i32
    return %c0_i32, %c0_i32_0 : i32, i32
  }
  func.func @transform_4(%arg0: i32, %arg1: i32) -> (i32, i32) {
    %c0_i32 = arith.constant 0 : i32
    %c0_i32_0 = arith.constant 0 : i32
    %c0_i32_1 = arith.constant 0 : i32
    return %c0_i32, %c0_i32_0 : i32, i32
  }
  func.func @transform_5(%arg0: i32, %arg1: i32) -> (i32, i32) {
    %c0_i32 = arith.constant 0 : i32
    %c0_i32_0 = arith.constant 0 : i32
    return %arg0, %c0_i32 : i32, i32
  }
}

</mosaic_0001>

<llo_original>
// kernel: tpu_custom_call.1
$region0: #{tpu_custom_call.1}
  #allocation0 [shape = 'u32[]', space=smem, size = 0x4, offset = 0x4, fixed_abs, tag = 'smem constant byte address 0x4 - core index']
  #allocation1 [shape = 'u32[144,128]{1,0:T(1,128)}', space=vmem, size = 0x12000, scoped, tag = 'internal scratch']
  #allocation2 [shape = 'f32[72,128]{1,0:T(8,128)}', space=vmem, size = 0x9000, scoped, tag = 'scratch operand']
  %s0 = inlined_call_operand.hbm [shape: f32[72,128], index: 0, kind: input, shape index: {}]
  %s1 = inlined_call_operand.hbm [shape: f32[128,256], index: 1, kind: input, shape index: {}]
  %s2 = inlined_call_operand.vmem [shape: f32[1,256], index: 2, kind: input, shape index: {}]
  %s3 = inlined_call_operand.hbm [shape: f32[256,128], index: 3, kind: input, shape index: {}]
  %s4 = inlined_call_operand.vmem [shape: f32[1,128], index: 4, kind: input, shape index: {}]
  %s5 = inlined_call_operand.hbm [shape: f32[72,128], index: 5, kind: output, shape index: {}]
  %s6 = sld [smem:[#allocation0]]
  $region50: #{tpu_custom_call.1} parent=0
    _
  %s8 = ssub.s32 1, %s6
  %s9 = scalar_select 0, %s8, %s6
  $region1: #{tpu_custom_call.1} parent=0
    #allocation3 [shape = 'u8[36864]{0}', space=vmem, size = 0x9000, scoped, tag = 'input window, operand 0, single buffered']
    #allocation4 [shape = 's32[1]{0}', space=sflag, size = 0x4, scoped, tag = 'scoped memory for tpu_custom_call.1']
    #allocation5 [shape = 's32[1]{0}', space=sflag, size = 0x4, scoped, tag = 'scoped memory for tpu_custom_call.1']
    #allocation6 [shape = 'u8[131072]{0}', space=vmem, size = 0x20000, scoped, tag = 'input window, operand 1, single buffered']
    #allocation7 [shape = 's32[1]{0}', space=sflag, size = 0x4, scoped, tag = 'scoped memory for tpu_custom_call.1']
    #allocation8 [shape = 'u8[131072]{0}', space=vmem, size = 0x20000, scoped, tag = 'input window, operand 3, single buffered']
    #allocation9 [shape = 'u8[36864]{0}', space=vmem, size = 0x9000, scoped, tag = 'output window, operand 0, single buffered']
    %10 = vsyncpa [#allocation4], 0
    %11 = vsyncpa [#allocation7], 0
    %12 = vsyncpa [#allocation5], 0
    // Predicated region
    $region2: #{tpu_custom_call.1} parent=1 // pred_check
      _
    $region3: #{tpu_custom_call.1} parent=1 // pred_check_branch
      %14 = sbr.rel (0) target = $region5
    $region4: #{tpu_custom_call.1} parent=1 // pred_region
      %s16 = ssub.s32 1152, 1152
      %17 = vsyncadd [#allocation4], %s16
      %s18 = sshll.u32 [#allocation3], 4
      %s19 = int_to_ptr.vmem [resolvable:$true] %s18
      %24 = dma.hbm_to_vmem [thread:$0]  %s0, 1152, %s19, [#allocation4], 128, 128, 8
    $region5: #{tpu_custom_call.1} parent=1 // pred_fallthru
      _
    // Predicated region
    $region6: #{tpu_custom_call.1} parent=1 // pred_check
      _
    $region7: #{tpu_custom_call.1} parent=1 // pred_check_branch
      %26 = sbr.rel (0) target = $region9
    $region8: #{tpu_custom_call.1} parent=1 // pred_region
      %s28 = ssub.s32 4096, 4096
      %29 = vsyncadd [#allocation7], %s28
      %s30 = sshll.u32 [#allocation6], 4
      %s31 = int_to_ptr.vmem [resolvable:$true] %s30
      %36 = dma.hbm_to_vmem [thread:$0]  %s1, 4096, %s31, [#allocation7], 256, 256, 16
    $region9: #{tpu_custom_call.1} parent=1 // pred_fallthru
      _
    // Predicated region
    $region10: #{tpu_custom_call.1} parent=1 // pred_check
      _
    $region11: #{tpu_custom_call.1} parent=1 // pred_check_branch
      %38 = sbr.rel (0) target = $region13
    $region12: #{tpu_custom_call.1} parent=1 // pred_region
      _
    $region13: #{tpu_custom_call.1} parent=1 // pred_fallthru
      _
    // Predicated region
    $region14: #{tpu_custom_call.1} parent=1 // pred_check
      _
    $region15: #{tpu_custom_call.1} parent=1 // pred_check_branch
      %40 = sbr.rel (0) target = $region17
    $region16: #{tpu_custom_call.1} parent=1 // pred_region
      %s42 = ssub.s32 4096, 4096
      %43 = vsyncadd [#allocation7], %s42
      %s44 = sshll.u32 [#allocation8], 4
      %s45 = int_to_ptr.vmem [resolvable:$true] %s44
      %50 = dma.hbm_to_vmem [thread:$0]  %s3, 4096, %s45, [#allocation7], 128, 128, 8
    $region17: #{tpu_custom_call.1} parent=1 // pred_fallthru
      _
    // Predicated region
    $region18: #{tpu_custom_call.1} parent=1 // pred_check
      _
    $region19: #{tpu_custom_call.1} parent=1 // pred_check_branch
      %52 = sbr.rel (0) target = $region21
    $region20: #{tpu_custom_call.1} parent=1 // pred_region
      _
    $region21: #{tpu_custom_call.1} parent=1 // pred_fallthru
      _
    // Predicated region
    $region22: #{tpu_custom_call.1} parent=1 // pred_check
      _
    $region23: #{tpu_custom_call.1} parent=1 // pred_check_branch
      %54 = sbr.rel (0) target = $region25
    $region24: #{tpu_custom_call.1} parent=1 // pred_region
      %55 = dma.done [#allocation4], 1152
    $region25: #{tpu_custom_call.1} parent=1 // pred_fallthru
      _
    // Predicated region
    $region26: #{tpu_custom_call.1} parent=1 // pred_check
      _
    $region27: #{tpu_custom_call.1} parent=1 // pred_check_branch
      %57 = sbr.rel (0) target = $region29
    $region28: #{tpu_custom_call.1} parent=1 // pred_region
      %58 = dma.done [#allocation7], 4096
    $region29: #{tpu_custom_call.1} parent=1 // pred_fallthru
      _
    // Predicated region
    $region30: #{tpu_custom_call.1} parent=1 // pred_check
      _
    $region31: #{tpu_custom_call.1} parent=1 // pred_check_branch
      %60 = sbr.rel (0) target = $region33
    $region32: #{tpu_custom_call.1} parent=1 // pred_region
      %61 = dma.done [#allocation7], 4096
    $region33: #{tpu_custom_call.1} parent=1 // pred_fallthru
      _
    %p62 = scmp.eq.s32.totalorder 0, 0
    // Predicated region
    $region34: #{tpu_custom_call.1} parent=1 // pred_check
      %p63 = pneg %p62
    $region35: #{tpu_custom_call.1} parent=1 // pred_check_branch
      %65 = sbr.rel (%p63) target = $region37
    $region36: #{tpu_custom_call.1} parent=1 // pred_region
      %v66 = vld [vmem:[%s4] sm:$0x1]
      %v68 = vlaneseq
      %v69 = vshrl.u32 %v68, 7
      %v70 = vsub.s32 0, %v69
      %v71 = vrot.slane %v66, %v70
      %73 = vst [vmem:[#allocation2] sm:$0xff] %v71
      %74 = vst [vmem:[#allocation2 + $0x8] sm:$0xff] %v71
      %75 = vst [vmem:[#allocation2 + $0x10] sm:$0xff] %v71
      %76 = vst [vmem:[#allocation2 + $0x18] sm:$0xff] %v71
      %77 = vst [vmem:[#allocation2 + $0x20] sm:$0xff] %v71
      %78 = vst [vmem:[#allocation2 + $0x28] sm:$0xff] %v71
      %79 = vst [vmem:[#allocation2 + $0x30] sm:$0xff] %v71
      %80 = vst [vmem:[#allocation2 + $0x38] sm:$0xff] %v71
      %81 = vst [vmem:[#allocation2 + $0x40] sm:$0xff] %v71
    $region37: #{tpu_custom_call.1} parent=1 // pred_fallthru
      _
    %v82 = vld [vmem:[#allocation3] sm:$0xff]
    %v83 = vld [vmem:[#allocation3 + $0x8] sm:$0xff]
    %v84 = vld [vmem:[#allocation3 + $0x10] sm:$0xff]
    %v85 = vld [vmem:[#allocation3 + $0x18] sm:$0xff]
    %v86 = vld [vmem:[#allocation3 + $0x20] sm:$0xff]
    %v87 = vld [vmem:[#allocation3 + $0x28] sm:$0xff]
    %v88 = vld [vmem:[#allocation3 + $0x30] sm:$0xff]
    %v89 = vld [vmem:[#allocation3 + $0x38] sm:$0xff]
    %v90 = vld [vmem:[#allocation3 + $0x40] sm:$0xff]
    %v91 = vld [vmem:[#allocation6] sm:$0xff]
    %v92 = vld [vmem:[#allocation6 + $0x8] sm:$0xff]
    %v93 = vld [vmem:[#allocation6 + $0x10] sm:$0xff]
    %v94 = vld [vmem:[#allocation6 + $0x18] sm:$0xff]
    %v95 = vld [vmem:[#allocation6 + $0x20] sm:$0xff]
    %v96 = vld [vmem:[#allocation6 + $0x28] sm:$0xff]
    %v97 = vld [vmem:[#allocation6 + $0x30] sm:$0xff]
    %v98 = vld [vmem:[#allocation6 + $0x38] sm:$0xff]
    %v99 = vld [vmem:[#allocation6 + $0x40] sm:$0xff]
    %v100 = vld [vmem:[#allocation6 + $0x48] sm:$0xff]
    %v101 = vld [vmem:[#allocation6 + $0x50] sm:$0xff]
    %v102 = vld [vmem:[#allocation6 + $0x58] sm:$0xff]
    %v103 = vld [vmem:[#allocation6 + $0x60] sm:$0xff]
    %v104 = vld [vmem:[#allocation6 + $0x68] sm:$0xff]
    %v105 = vld [vmem:[#allocation6 + $0x70] sm:$0xff]
    %v106 = vld [vmem:[#allocation6 + $0x78] sm:$0xff]
    %v107 = vld [vmem:[#allocation6 + $0x80] sm:$0xff]
    %v108 = vld [vmem:[#allocation6 + $0x88] sm:$0xff]
    %v109 = vld [vmem:[#allocation6 + $0x90] sm:$0xff]
    %v110 = vld [vmem:[#allocation6 + $0x98] sm:$0xff]
    %v111 = vld [vmem:[#allocation6 + $0xa0] sm:$0xff]
    %v112 = vld [vmem:[#allocation6 + $0xa8] sm:$0xff]
    %v113 = vld [vmem:[#allocation6 + $0xb0] sm:$0xff]
    %v114 = vld [vmem:[#allocation6 + $0xb8] sm:$0xff]
    %v115 = vld [vmem:[#allocation6 + $0xc0] sm:$0xff]
    %v116 = vld [vmem:[#allocation6 + $0xc8] sm:$0xff]
    %v117 = vld [vmem:[#allocation6 + $0xd0] sm:$0xff]
    %v118 = vld [vmem:[#allocation6 + $0xd8] sm:$0xff]
    %v119 = vld [vmem:[#allocation6 + $0xe0] sm:$0xff]
    %v120 = vld [vmem:[#allocation6 + $0xe8] sm:$0xff]
    %v121 = vld [vmem:[#allocation6 + $0xf0] sm:$0xff]
    %v122 = vld [vmem:[#allocation6 + $0xf8] sm:$0xff]
    %s123 = smul.u32 0, 256
    %s124 = sshra.s32 %s123, 7
    %s125 = sand.u32 %s123, 127
    %s126 = scalar_lea.vmem %s2, %s124
    %v127 = vld [vmem:[%s126] sm:$0x3]
    %v129 = vlaneseq
    %v130 = vshrl.u32 %v129, 7
    %v131 = vsub.s32 0, %v130
    %v132 = vrot.slane %v127, %v131
    %v133 = vlaneseq
    %v134 = vshrl.u32 %v133, 7
    %v135 = vsub.s32 1, %v134
    %v136 = vrot.slane %v127, %v135
    %139 = vmatprep.subr.mxu0 %v92
    %140 = vmatpush1.msra.mxu0 %v91
    %141 = vmatprep.subr.mxu0 %v94
    %142 = vmatpush1.msra.mxu0 %v93
    %143 = vmatprep.subr.mxu0 %v96
    %144 = vmatpush1.msra.mxu0 %v95
    %145 = vmatprep.subr.mxu0 %v98
    %146 = vmatpush1.msra.mxu0 %v97
    %147 = vmatprep.subr.mxu0 %v100
    %148 = vmatpush1.msra.mxu0 %v99
    %149 = vmatprep.subr.mxu0 %v102
    %150 = vmatpush1.msra.mxu0 %v101
    %151 = vmatprep.subr.mxu0 %v104
    %152 = vmatpush1.msra.mxu0 %v103
    %153 = vmatprep.subr.mxu0 %v106
    %154 = vmatpush1.msra.mxu0 %v105
    %155 = vmatprep.subr.mxu0 %v108
    %156 = vmatpush1.msra.mxu0 %v107
    %157 = vmatprep.subr.mxu0 %v110
    %158 = vmatpush1.msra.mxu0 %v109
    %159 = vmatprep.subr.mxu0 %v112
    %160 = vmatpush1.msra.mxu0 %v111
    %161 = vmatprep.subr.mxu0 %v114
    %162 = vmatpush1.msra.mxu0 %v113
    %163 = vmatprep.subr.mxu0 %v116
    %164 = vmatpush1.msra.mxu0 %v115
    %165 = vmatprep.subr.mxu0 %v118
    %166 = vmatpush1.msra.mxu0 %v117
    %167 = vmatprep.subr.mxu0 %v120
    %168 = vmatpush1.msra.mxu0 %v119
    %169 = vmatprep.subr.mxu0 %v122
    %170 = vmatpush1.msra.mxu0 %v121
    %171 = vmatprep.subr.mxu0 0.0
    %172 = vmatpush1.msra.mxu0 0.0
    %173 = vmatprep.subr.mxu0 0.0
    %174 = vmatpush1.msra.mxu0 0.0
    %175 = vmatprep.subr.mxu0 0.0
    %176 = vmatpush1.msra.mxu0 0.0
    %177 = vmatprep.subr.mxu0 0.0
    %178 = vmatpush1.msra.mxu0 0.0
    %179 = vmatprep.subr.mxu0 0.0
    %180 = vmatpush1.msra.mxu0 0.0
    %181 = vmatprep.subr.mxu0 0.0
    %182 = vmatpush1.msra.mxu0 0.0
    %183 = vmatprep.subr.mxu0 0.0
    %184 = vmatpush1.msra.mxu0 0.0
    %185 = vmatprep.subr.mxu0 0.0
    %186 = vmatpush1.msra.mxu0 0.0
    %187 = vmatprep.subr.mxu0 0.0
    %188 = vmatpush1.msra.mxu0 0.0
    %189 = vmatprep.subr.mxu0 0.0
    %190 = vmatpush1.msra.mxu0 0.0
    %191 = vmatprep.subr.mxu0 0.0
    %192 = vmatpush1.msra.mxu0 0.0
    %193 = vmatprep.subr.mxu0 0.0
    %194 = vmatpush1.msra.mxu0 0.0
    %195 = vmatprep.subr.mxu0 0.0
    %196 = vmatpush1.msra.mxu0 0.0
    %197 = vmatprep.subr.mxu0 0.0
    %198 = vmatpush1.msra.mxu0 0.0
    %199 = vmatprep.subr.mxu0 0.0
    %200 = vmatpush1.msra.mxu0 0.0
    %201 = vmatprep.subr.mxu0 0.0
    %202 = vmatpush1.msra.mxu0 0.0
    %203 = vmatprep.mubr.f32.mxu0 0.0
    %204 = vmatmul.mubr.f32.gmra.mrb[0].mxu0 %v82
    %v205 = vpop.f32.mrb[0].mxu0
    %v206 = vadd.f32 %v132, %v205
    %v207 = vpop.f32.mrb[0].mxu0
    %v208 = vadd.f32 %v136, %v207
    %209 = vmatprep.mubr.f32.mxu0 0.0
    %210 = vmatmul.mubr.f32.gmra.mrb[0].mxu0 %v83
    %v211 = vpop.f32.mrb[0].mxu0
    %v212 = vadd.f32 %v132, %v211
    %v213 = vpop.f32.mrb[0].mxu0
    %v214 = vadd.f32 %v136, %v213
    %215 = vmatprep.mubr.f32.mxu0 0.0
    %216 = vmatmul.mubr.f32.gmra.mrb[0].mxu0 %v84
    %v217 = vpop.f32.mrb[0].mxu0
    %v218 = vadd.f32 %v132, %v217
    %v219 = vpop.f32.mrb[0].mxu0
    %v220 = vadd.f32 %v136, %v219
    %221 = vmatprep.mubr.f32.mxu0 0.0
    %222 = vmatmul.mubr.f32.gmra.mrb[0].mxu0 %v85
    %v223 = vpop.f32.mrb[0].mxu0
    %v224 = vadd.f32 %v132, %v223
    %v225 = vpop.f32.mrb[0].mxu0
    %v226 = vadd.f32 %v136, %v225
    %227 = vmatprep.mubr.f32.mxu0 0.0
    %228 = vmatmul.mubr.f32.gmra.mrb[0].mxu0 %v86
    %v229 = vpop.f32.mrb[0].mxu0
    %v230 = vadd.f32 %v132, %v229
    %v231 = vpop.f32.mrb[0].mxu0
    %v232 = vadd.f32 %v136, %v231
    %233 = vmatprep.mubr.f32.mxu0 0.0
    %234 = vmatmul.mubr.f32.gmra.mrb[0].mxu0 %v87
    %v235 = vpop.f32.mrb[0].mxu0
    %v236 = vadd.f32 %v132, %v235
    %v237 = vpop.f32.mrb[0].mxu0
    %v238 = vadd.f32 %v136, %v237
    %239 = vmatprep.mubr.f32.mxu0 0.0
    %240 = vmatmul.mubr.f32.gmra.mrb[0].mxu0 %v88
    %v241 = vpop.f32.mrb[0].mxu0
    %v242 = vadd.f32 %v132, %v241
    %v243 = vpop.f32.mrb[0].mxu0
    %v244 = vadd.f32 %v136, %v243
    %245 = vmatprep.mubr.f32.mxu0 0.0
    %246 = vmatmul.mubr.f32.gmra.mrb[0].mxu0 %v89
    %v247 = vpop.f32.mrb[0].mxu0
    %v248 = vadd.f32 %v132, %v247
    %v249 = vpop.f32.mrb[0].mxu0
    %v250 = vadd.f32 %v136, %v249
    %251 = vmatprep.mubr.f32.mxu0 0.0
    %252 = vmatmul.mubr.f32.gmra.mrb[0].mxu0 %v90
    %v253 = vpop.f32.mrb[0].mxu0
    %v254 = vadd.f32 %v132, %v253
    %v255 = vpop.f32.mrb[0].mxu0
    %v256 = vadd.f32 %v136, %v255
    %257 = vdwg.mxu0
    %v258 = vmul.f32 %v206, 0.5
    %v259 = vmul.f32 %v208, 0.5
    %v260 = vmul.f32 %v212, 0.5
    %v261 = vmul.f32 %v214, 0.5
    %v262 = vmul.f32 %v218, 0.5
    %v263 = vmul.f32 %v220, 0.5
    %v264 = vmul.f32 %v224, 0.5
    %v265 = vmul.f32 %v226, 0.5
    %v266 = vmul.f32 %v230, 0.5
    %v267 = vmul.f32 %v232, 0.5
    %v268 = vmul.f32 %v236, 0.5
    %v269 = vmul.f32 %v238, 0.5
    %v270 = vmul.f32 %v242, 0.5
    %v271 = vmul.f32 %v244, 0.5
    %v272 = vmul.f32 %v248, 0.5
    %v273 = vmul.f32 %v250, 0.5
    %v274 = vmul.f32 %v254, 0.5
    %v275 = vmul.f32 %v256, 0.5
    %v276 = vmul.f32 %v206, 0.70710677
    %v277 = vmul.f32 %v208, 0.70710677
    %v278 = vmul.f32 %v212, 0.70710677
    %v279 = vmul.f32 %v214, 0.70710677
    %v280 = vmul.f32 %v218, 0.70710677
    %v281 = vmul.f32 %v220, 0.70710677
    %v282 = vmul.f32 %v224, 0.70710677
    %v283 = vmul.f32 %v226, 0.70710677
    %v284 = vmul.f32 %v230, 0.70710677
    %v285 = vmul.f32 %v232, 0.70710677
    %v286 = vmul.f32 %v236, 0.70710677
    %v287 = vmul.f32 %v238, 0.70710677
    %v288 = vmul.f32 %v242, 0.70710677
    %v289 = vmul.f32 %v244, 0.70710677
    %v290 = vmul.f32 %v248, 0.70710677
    %v291 = vmul.f32 %v250, 0.70710677
    %v292 = vmul.f32 %v254, 0.70710677
    %v293 = vmul.f32 %v256, 0.70710677
    %v294 = verf.f32.pop %v276
    %v295 = verf.f32.pop %v277
    %v296 = verf.f32.pop %v278
    %v297 = verf.f32.pop %v279
    %v298 = verf.f32.pop %v280
    %v299 = verf.f32.pop %v281
    %v300 = verf.f32.pop %v282
    %v301 = verf.f32.pop %v283
    %v302 = verf.f32.pop %v284
    %v303 = verf.f32.pop %v285
    %v304 = verf.f32.pop %v286
    %v305 = verf.f32.pop %v287
    %v306 = verf.f32.pop %v288
    %v307 = verf.f32.pop %v289
    %v308 = verf.f32.pop %v290
    %v309 = verf.f32.pop %v291
    %v310 = verf.f32.pop %v292
    %v311 = verf.f32.pop %v293
    %v312 = vadd.f32 %v294, 1.0
    %v313 = vadd.f32 %v295, 1.0
    %v314 = vadd.f32 %v296, 1.0
    %v315 = vadd.f32 %v297, 1.0
    %v316 = vadd.f32 %v298, 1.0
    %v317 = vadd.f32 %v299, 1.0
    %v318 = vadd.f32 %v300, 1.0
    %v319 = vadd.f32 %v301, 1.0
    %v320 = vadd.f32 %v302, 1.0
    %v321 = vadd.f32 %v303, 1.0
    %v322 = vadd.f32 %v304, 1.0
    %v323 = vadd.f32 %v305, 1.0
    %v324 = vadd.f32 %v306, 1.0
    %v325 = vadd.f32 %v307, 1.0
    %v326 = vadd.f32 %v308, 1.0
    %v327 = vadd.f32 %v309, 1.0
    %v328 = vadd.f32 %v310, 1.0
    %v329 = vadd.f32 %v311, 1.0
    %v330 = vmul.f32 %v258, %v312
    %v331 = vmul.f32 %v259, %v313
    %v332 = vmul.f32 %v260, %v314
    %v333 = vmul.f32 %v261, %v315
    %v334 = vmul.f32 %v262, %v316
    %v335 = vmul.f32 %v263, %v317
    %v336 = vmul.f32 %v264, %v318
    %v337 = vmul.f32 %v265, %v319
    %v338 = vmul.f32 %v266, %v320
    %v339 = vmul.f32 %v267, %v321
    %v340 = vmul.f32 %v268, %v322
    %v341 = vmul.f32 %v269, %v323
    %v342 = vmul.f32 %v270, %v324
    %v343 = vmul.f32 %v271, %v325
    %v344 = vmul.f32 %v272, %v326
    %v345 = vmul.f32 %v273, %v327
    %v346 = vmul.f32 %v274, %v328
    %v347 = vmul.f32 %v275, %v329
    %v348 = vld [vmem:[#allocation2] sm:$0xff]
    %v349 = vld [vmem:[#allocation2 + $0x8] sm:$0xff]
    %v350 = vld [vmem:[#allocation2 + $0x10] sm:$0xff]
    %v351 = vld [vmem:[#allocation2 + $0x18] sm:$0xff]
    %v352 = vld [vmem:[#allocation2 + $0x20] sm:$0xff]
    %v353 = vld [vmem:[#allocation2 + $0x28] sm:$0xff]
    %v354 = vld [vmem:[#allocation2 + $0x30] sm:$0xff]
    %v355 = vld [vmem:[#allocation2 + $0x38] sm:$0xff]
    %v356 = vld [vmem:[#allocation2 + $0x40] sm:$0xff]
    %v357 = vld [vmem:[#allocation8] sm:$0xff]
    %v358 = vld [vmem:[#allocation8 + $0x8] sm:$0xff]
    %v359 = vld [vmem:[#allocation8 + $0x10] sm:$0xff]
    %v360 = vld [vmem:[#allocation8 + $0x18] sm:$0xff]
    %v361 = vld [vmem:[#allocation8 + $0x20] sm:$0xff]
    %v362 = vld [vmem:[#allocation8 + $0x28] sm:$0xff]
    %v363 = vld [vmem:[#allocation8 + $0x30] sm:$0xff]
    %v364 = vld [vmem:[#allocation8 + $0x38] sm:$0xff]
    %v365 = vld [vmem:[#allocation8 + $0x40] sm:$0xff]
    %v366 = vld [vmem:[#allocation8 + $0x48] sm:$0xff]
    %v367 = vld [vmem:[#allocation8 + $0x50] sm:$0xff]
    %v368 = vld [vmem:[#allocation8 + $0x58] sm:$0xff]
    %v369 = vld [vmem:[#allocation8 + $0x60] sm:$0xff]
    %v370 = vld [vmem:[#allocation8 + $0x68] sm:$0xff]
    %v371 = vld [vmem:[#allocation8 + $0x70] sm:$0xff]
    %v372 = vld [vmem:[#allocation8 + $0x78] sm:$0xff]
    %v373 = vld [vmem:[#allocation8 + $0x80] sm:$0xff]
    %v374 = vld [vmem:[#allocation8 + $0x88] sm:$0xff]
    %v375 = vld [vmem:[#allocation8 + $0x90] sm:$0xff]
    %v376 = vld [vmem:[#allocation8 + $0x98] sm:$0xff]
    %v377 = vld [vmem:[#allocation8 + $0xa0] sm:$0xff]
    %v378 = vld [vmem:[#allocation8 + $0xa8] sm:$0xff]
    %v379 = vld [vmem:[#allocation8 + $0xb0] sm:$0xff]
    %v380 = vld [vmem:[#allocation8 + $0xb8] sm:$0xff]
    %v381 = vld [vmem:[#allocation8 + $0xc0] sm:$0xff]
    %v382 = vld [vmem:[#allocation8 + $0xc8] sm:$0xff]
    %v383 = vld [vmem:[#allocation8 + $0xd0] sm:$0xff]
    %v384 = vld [vmem:[#allocation8 + $0xd8] sm:$0xff]
    %v385 = vld [vmem:[#allocation8 + $0xe0] sm:$0xff]
    %v386 = vld [vmem:[#allocation8 + $0xe8] sm:$0xff]
    %v387 = vld [vmem:[#allocation8 + $0xf0] sm:$0xff]
    %v388 = vld [vmem:[#allocation8 + $0xf8] sm:$0xff]
    %389 = vmatprep.subr.mxu0 0.0
    %390 = vmatpush1.msra.mxu0 %v357
    %391 = vmatprep.subr.mxu0 0.0
    %392 = vmatpush1.msra.mxu0 %v358
    %393 = vmatprep.subr.mxu0 0.0
    %394 = vmatpush1.msra.mxu0 %v359
    %395 = vmatprep.subr.mxu0 0.0
    %396 = vmatpush1.msra.mxu0 %v360
    %397 = vmatprep.subr.mxu0 0.0
    %398 = vmatpush1.msra.mxu0 %v361
    %399 = vmatprep.subr.mxu0 0.0
    %400 = vmatpush1.msra.mxu0 %v362
    %401 = vmatprep.subr.mxu0 0.0
    %402 = vmatpush1.msra.mxu0 %v363
    %403 = vmatprep.subr.mxu0 0.0
    %404 = vmatpush1.msra.mxu0 %v364
    %405 = vmatprep.subr.mxu0 0.0
    %406 = vmatpush1.msra.mxu0 %v365
    %407 = vmatprep.subr.mxu0 0.0
    %408 = vmatpush1.msra.mxu0 %v366
    %409 = vmatprep.subr.mxu0 0.0
    %410 = vmatpush1.msra.mxu0 %v367
    %411 = vmatprep.subr.mxu0 0.0
    %412 = vmatpush1.msra.mxu0 %v368
    %413 = vmatprep.subr.mxu0 0.0
    %414 = vmatpush1.msra.mxu0 %v369
    %415 = vmatprep.subr.mxu0 0.0
    %416 = vmatpush1.msra.mxu0 %v370
    %417 = vmatprep.subr.mxu0 0.0
    %418 = vmatpush1.msra.mxu0 %v371
    %419 = vmatprep.subr.mxu0 0.0
    %420 = vmatpush1.msra.mxu0 %v372
    %421 = vmatprep.subr.mxu0 0.0
    %422 = vmatpush1.msra.mxu0 %v373
    %423 = vmatprep.subr.mxu0 0.0
    %424 = vmatpush1.msra.mxu0 %v374
    %425 = vmatprep.subr.mxu0 0.0
    %426 = vmatpush1.msra.mxu0 %v375
    %427 = vmatprep.subr.mxu0 0.0
    %428 = vmatpush1.msra.mxu0 %v376
    %429 = vmatprep.subr.mxu0 0.0
    %430 = vmatpush1.msra.mxu0 %v377
    %431 = vmatprep.subr.mxu0 0.0
    %432 = vmatpush1.msra.mxu0 %v378
    %433 = vmatprep.subr.mxu0 0.0
    %434 = vmatpush1.msra.mxu0 %v379
    %435 = vmatprep.subr.mxu0 0.0
    %436 = vmatpush1.msra.mxu0 %v380
    %437 = vmatprep.subr.mxu0 0.0
    %438 = vmatpush1.msra.mxu0 %v381
    %439 = vmatprep.subr.mxu0 0.0
    %440 = vmatpush1.msra.mxu0 %v382
    %441 = vmatprep.subr.mxu0 0.0
    %442 = vmatpush1.msra.mxu0 %v383
    %443 = vmatprep.subr.mxu0 0.0
    %444 = vmatpush1.msra.mxu0 %v384
    %445 = vmatprep.subr.mxu0 0.0
    %446 = vmatpush1.msra.mxu0 %v385
    %447 = vmatprep.subr.mxu0 0.0
    %448 = vmatpush1.msra.mxu0 %v386
    %449 = vmatprep.subr.mxu0 0.0
    %450 = vmatpush1.msra.mxu0 %v387
    %451 = vmatprep.subr.mxu0 0.0
    %452 = vmatpush1.msra.mxu0 %v388
    %453 = vmatprep.mubr.f32.mxu0 %v331
    %454 = vmatmul.mubr.f32.gmra.mrb[0].mxu0 %v330
    %v455 = vpop.f32.mrb[0].mxu0
    %v456 = vadd.f32 0.0, %v455
    %v457 = vpop.f32.mrb[0].mxu0
    %458 = vmatprep.mubr.f32.mxu0 %v333
    %459 = vmatmul.mubr.f32.gmra.mrb[0].mxu0 %v332
    %v460 = vpop.f32.mrb[0].mxu0
    %v461 = vadd.f32 0.0, %v460
    %v462 = vpop.f32.mrb[0].mxu0
    %463 = vmatprep.mubr.f32.mxu0 %v335
    %464 = vmatmul.mubr.f32.gmra.mrb[0].mxu0 %v334
    %v465 = vpop.f32.mrb[0].mxu0
    %v466 = vadd.f32 0.0, %v465
    %v467 = vpop.f32.mrb[0].mxu0
    %468 = vmatprep.mubr.f32.mxu0 %v337
    %469 = vmatmul.mubr.f32.gmra.mrb[0].mxu0 %v336
    %v470 = vpop.f32.mrb[0].mxu0
    %v471 = vadd.f32 0.0, %v470
    %v472 = vpop.f32.mrb[0].mxu0
    %473 = vmatprep.mubr.f32.mxu0 %v339
    %474 = vmatmul.mubr.f32.gmra.mrb[0].mxu0 %v338
    %v475 = vpop.f32.mrb[0].mxu0
    %v476 = vadd.f32 0.0, %v475
    %v477 = vpop.f32.mrb[0].mxu0
    %478 = vmatprep.mubr.f32.mxu0 %v341
    %479 = vmatmul.mubr.f32.gmra.mrb[0].mxu0 %v340
    %v480 = vpop.f32.mrb[0].mxu0
    %v481 = vadd.f32 0.0, %v480
    %v482 = vpop.f32.mrb[0].mxu0
    %483 = vmatprep.mubr.f32.mxu0 %v343
    %484 = vmatmul.mubr.f32.gmra.mrb[0].mxu0 %v342
    %v485 = vpop.f32.mrb[0].mxu0
    %v486 = vadd.f32 0.0, %v485
    %v487 = vpop.f32.mrb[0].mxu0
    %488 = vmatprep.mubr.f32.mxu0 %v345
    %489 = vmatmul.mubr.f32.gmra.mrb[0].mxu0 %v344
    %v490 = vpop.f32.mrb[0].mxu0
    %v491 = vadd.f32 0.0, %v490
    %v492 = vpop.f32.mrb[0].mxu0
    %493 = vmatprep.mubr.f32.mxu0 %v347
    %494 = vmatmul.mubr.f32.gmra.mrb[0].mxu0 %v346
    %v495 = vpop.f32.mrb[0].mxu0
    %v496 = vadd.f32 0.0, %v495
    %v497 = vpop.f32.mrb[0].mxu0
    %498 = vdwg.mxu0
    %v499 = vadd.f32 %v348, %v456
    %v500 = vadd.f32 %v349, %v461
    %v501 = vadd.f32 %v350, %v466
    %v502 = vadd.f32 %v351, %v471
    %v503 = vadd.f32 %v352, %v476
    %v504 = vadd.f32 %v353, %v481
    %v505 = vadd.f32 %v354, %v486
    %v506 = vadd.f32 %v355, %v491
    %v507 = vadd.f32 %v356, %v496
    %508 = vst [vmem:[#allocation2] sm:$0xff] %v499
    %509 = vst [vmem:[#allocation2 + $0x8] sm:$0xff] %v500
    %510 = vst [vmem:[#allocation2 + $0x10] sm:$0xff] %v501
    %511 = vst [vmem:[#allocation2 + $0x18] sm:$0xff] %v502
    %512 = vst [vmem:[#allocation2 + $0x20] sm:$0xff] %v503
    %513 = vst [vmem:[#allocation2 + $0x28] sm:$0xff] %v504
    %514 = vst [vmem:[#allocation2 + $0x30] sm:$0xff] %v505
    %515 = vst [vmem:[#allocation2 + $0x38] sm:$0xff] %v506
    %516 = vst [vmem:[#allocation2 + $0x40] sm:$0xff] %v507
    // Predicated region
    $region38: #{tpu_custom_call.1} parent=1 // pred_check
      %p517 = pneg %p62
    $region39: #{tpu_custom_call.1} parent=1 // pred_check_branch
      %519 = sbr.rel (%p517) target = $region41
    $region40: #{tpu_custom_call.1} parent=1 // pred_region
      %v520 = vld [vmem:[#allocation2] sm:$0xff]
      %v521 = vld [vmem:[#allocation2 + $0x8] sm:$0xff]
      %v522 = vld [vmem:[#allocation2 + $0x10] sm:$0xff]
      %v523 = vld [vmem:[#allocation2 + $0x18] sm:$0xff]
      %v524 = vld [vmem:[#allocation2 + $0x20] sm:$0xff]
      %v525 = vld [vmem:[#allocation2 + $0x28] sm:$0xff]
      %v526 = vld [vmem:[#allocation2 + $0x30] sm:$0xff]
      %v527 = vld [vmem:[#allocation2 + $0x38] sm:$0xff]
      %v528 = vld [vmem:[#allocation2 + $0x40] sm:$0xff]
      %v529 = vmul.f32 %v520, 0.5
      %v530 = vmul.f32 %v521, 0.5
      %v531 = vmul.f32 %v522, 0.5
      %v532 = vmul.f32 %v523, 0.5
      %v533 = vmul.f32 %v524, 0.5
      %v534 = vmul.f32 %v525, 0.5
      %v535 = vmul.f32 %v526, 0.5
      %v536 = vmul.f32 %v527, 0.5
      %v537 = vmul.f32 %v528, 0.5
      %v538 = vmul.f32 %v520, 0.70710677
      %v539 = vmul.f32 %v521, 0.70710677
      %v540 = vmul.f32 %v522, 0.70710677
      %v541 = vmul.f32 %v523, 0.70710677
      %v542 = vmul.f32 %v524, 0.70710677
      %v543 = vmul.f32 %v525, 0.70710677
      %v544 = vmul.f32 %v526, 0.70710677
      %v545 = vmul.f32 %v527, 0.70710677
      %v546 = vmul.f32 %v528, 0.70710677
      %v547 = verf.f32.pop %v538
      %v548 = verf.f32.pop %v539
      %v549 = verf.f32.pop %v540
      %v550 = verf.f32.pop %v541
      %v551 = verf.f32.pop %v542
      %v552 = verf.f32.pop %v543
      %v553 = verf.f32.pop %v544
      %v554 = verf.f32.pop %v545
      %v555 = verf.f32.pop %v546
      %v556 = vadd.f32 %v547, 1.0
      %v557 = vadd.f32 %v548, 1.0
      %v558 = vadd.f32 %v549, 1.0
      %v559 = vadd.f32 %v550, 1.0
      %v560 = vadd.f32 %v551, 1.0
      %v561 = vadd.f32 %v552, 1.0
      %v562 = vadd.f32 %v553, 1.0
      %v563 = vadd.f32 %v554, 1.0
      %v564 = vadd.f32 %v555, 1.0
      %v565 = vmul.f32 %v529, %v556
      %v566 = vmul.f32 %v530, %v557
      %v567 = vmul.f32 %v531, %v558
      %v568 = vmul.f32 %v532, %v559
      %v569 = vmul.f32 %v533, %v560
      %v570 = vmul.f32 %v534, %v561
      %v571 = vmul.f32 %v535, %v562
      %v572 = vmul.f32 %v536, %v563
      %v573 = vmul.f32 %v537, %v564
      %574 = vst [vmem:[#allocation9] sm:$0xff] %v565
      %575 = vst [vmem:[#allocation9 + $0x8] sm:$0xff] %v566
      %576 = vst [vmem:[#allocation9 + $0x10] sm:$0xff] %v567
      %577 = vst [vmem:[#allocation9 + $0x18] sm:$0xff] %v568
      %578 = vst [vmem:[#allocation9 + $0x20] sm:$0xff] %v569
      %579 = vst [vmem:[#allocation9 + $0x28] sm:$0xff] %v570
      %580 = vst [vmem:[#allocation9 + $0x30] sm:$0xff] %v571
      %581 = vst [vmem:[#allocation9 + $0x38] sm:$0xff] %v572
      %582 = vst [vmem:[#allocation9 + $0x40] sm:$0xff] %v573
    $region41: #{tpu_custom_call.1} parent=1 // pred_fallthru
      _
    // Predicated region
    $region42: #{tpu_custom_call.1} parent=1 // pred_check
      _
    $region43: #{tpu_custom_call.1} parent=1 // pred_check_branch
      %584 = sbr.rel (0) target = $region45
    $region44: #{tpu_custom_call.1} parent=1 // pred_region
      %s586 = ssub.s32 1152, 1152
      %587 = vsyncadd [#allocation5], %s586
      %s588 = sshll.u32 [#allocation9], 4
      %s589 = int_to_ptr.vmem [resolvable:$true] %s588
      %594 = dma.vmem_to_hbm [thread:$0]  %s589, 1152, %s5, [#allocation5], 128, 128, 8
    $region45: #{tpu_custom_call.1} parent=1 // pred_fallthru
      _
    // Predicated region
    $region46: #{tpu_custom_call.1} parent=1 // pred_check
      _
    $region47: #{tpu_custom_call.1} parent=1 // pred_check_branch
      %596 = sbr.rel (0) target = $region49
    $region48: #{tpu_custom_call.1} parent=1 // pred_region
      %597 = dma.done [#allocation5], 1152
    $region49: #{tpu_custom_call.1} parent=1 // pred_fallthru
      _
    %598 = vsyncpa [#allocation4], 1
    %599 = vsyncpa [#allocation7], 1
    %600 = vsyncpa [#allocation5], 1

</llo_original>
